<compile_context>
chip_gen: v6e
topology: v6e:2x2x1
jax: 0.10.0
libtpu: 0.0.40
codegen_flags: <defaults>
</compile_context>

<pallas_src>
import functools

import jax
import jax.numpy as jnp
from jax import lax
from jax.experimental import pallas as pl
from jax.experimental.pallas import tpu as pltpu


def _center_loss_kernel(feats_ref, labels_ref, centers_ref, partial_ref, *,
                        valid_rows, tile_rows):
    # feats_ref   : VMEM (tile_rows, D) input block
    # labels_ref  : VMEM (tile_rows, 1) int32 input block
    # centers_ref : VMEM (C, D) full centers table (resident across grid)
    # partial_ref : VMEM (1, D) f32 per-tile partial-sum output block
    tm, _ = feats_ref.shape
    C = centers_ref.shape[0]

    labels = labels_ref[...]                                    # (tm, 1) int32
    class_ids = lax.broadcasted_iota(jnp.int32, (tm, C), 1)     # (tm, C)
    onehot = (class_ids == labels).astype(jnp.float32)          # (tm, C)

    # Gather centers[labels] on the MXU (otherwise idle in this kernel).
    gathered = jnp.dot(onehot, centers_ref[...].astype(jnp.float32),
                       preferred_element_type=jnp.float32)      # (tm, D)

    d = feats_ref[...].astype(jnp.float32) - gathered
    sq = d * d                                                  # (tm, D) on VPU

    # Mask rows beyond the true batch size (only present when B % tile != 0).
    if valid_rows % tile_rows != 0:
        pid = pl.program_id(0)
        row = pid * tile_rows + lax.broadcasted_iota(jnp.int32, (tm, 1), 0)
        sq = jnp.where(row < valid_rows, sq, 0.0)

    # Single sublane reduction per tile -> lane-dense (1, D) partial sum.
    partial_ref[...] = jnp.sum(sq, axis=0, keepdims=True)


def _round_up(x, m):
    return (x + m - 1) // m * m


def center_loss(feats, labels, centers, *, tile_rows=None):
    """feats: [B, D], labels: [B] int, centers: [C, D] -> scalar f32 loss."""
    B, D = feats.shape
    C, D2 = centers.shape
    assert D == D2, (feats.shape, centers.shape)

    if tile_rows is None:
        tile_rows = min(512, _round_up(B, 8))
    tile_rows = _round_up(tile_rows, 8)

    B_pad = _round_up(B, tile_rows)
    num_tiles = B_pad // tile_rows

    labels2d = labels.astype(jnp.int32).reshape(B, 1)
    feats_p = feats
    if B_pad != B:
        feats_p = jnp.pad(feats_p, ((0, B_pad - B), (0, 0)))
        labels2d = jnp.pad(labels2d, ((0, B_pad - B), (0, 0)))

    kernel = functools.partial(_center_loss_kernel,
                               valid_rows=B, tile_rows=tile_rows)

    # Rough VMEM budget: resident centers + double-buffered feats/labels tiles
    # + output block, plus headroom.  Capped below v7x's 64 MiB physical VMEM.
    itemsize = 4
    vmem_needed = (C * D * itemsize
                   + 2 * 2 * (tile_rows * D * itemsize + tile_rows * itemsize)
                   + 2 * D * itemsize
                   + (2 << 20))
    vmem_limit = int(min(max(vmem_needed, 4 << 20), 48 << 20))

    partials = pl.pallas_call(
        kernel,
        out_shape=jax.ShapeDtypeStruct((num_tiles, D), jnp.float32),
        grid=(num_tiles,),
        in_specs=[
            pl.BlockSpec((tile_rows, D), lambda i: (i, 0)),   # feats tile
            pl.BlockSpec((tile_rows, 1), lambda i: (i, 0)),   # labels tile
            pl.BlockSpec((C, D), lambda i: (0, 0)),           # centers (resident)
        ],
        out_specs=pl.BlockSpec((1, D), lambda i: (i, 0)),     # lane-dense partials
        compiler_params=pltpu.CompilerParams(
            dimension_semantics=("parallel",),
            vmem_limit_bytes=vmem_limit,
        ),
    )(feats_p, labels2d, centers)

    # Tiny final reduction (num_tiles x D) + mean normalization in the wrapper.
    return jnp.sum(partials) / jnp.float32(B * D)


if __name__ == "__main__":
    # Small, deterministic setup consistent with CenterLoss(num_classes, feat_dim)
    num_classes = 10
    feat_dim = 128
    batch = 8

    key = jax.random.PRNGKey(0)
    k_centers, k_feats, k_labels = jax.random.split(key, 3)

    # nn.Parameter(torch.randn(num_classes, feat_dim)) -> deterministic normal init
    centers = jax.random.normal(k_centers, (num_classes, feat_dim), dtype=jnp.float32)
    feats = jax.random.normal(k_feats, (batch, feat_dim), dtype=jnp.float32)
    labels = jax.random.randint(k_labels, (batch,), 0, num_classes, dtype=jnp.int32)

    loss = jax.block_until_ready(center_loss(feats, labels, centers))

    # Pure-JAX reference for correctness
    ref = jnp.mean((feats - centers[labels]) ** 2)
    assert jnp.allclose(loss, ref, rtol=1e-5, atol=1e-5), (loss, ref)

    print("KERNEL_OK")
</pallas_src>

<mosaic_0001>
module attributes {stable_mosaic.version = 11 : i64} {
  func.func @_center_loss_kernel(%arg0: i32, %arg1: memref<8x128xf32, #tpu.memory_space<vmem>>, %arg2: memref<8x1xi32, #tpu.memory_space<vmem>>, %arg3: memref<10x128xf32, #tpu.memory_space<vmem>>, %arg4: memref<1x128xf32, #tpu.memory_space<vmem>>) attributes {dimension_semantics = [#tpu.dimension_semantics<parallel>], iteration_bounds = array<i64: 1>, scalar_prefetch = 0 : i64, scratch_operands = 0 : i64, tpu.core_type = #tpu.core_type<tc>, window_params = [{transform_indices = @transform_0, window_bounds = array<i64: 8, 128>}, {transform_indices = @transform_1, window_bounds = array<i64: 8, 1>}, {pipeline_mode = #tpu.pipeline_mode<synchronous>, transform_indices = @transform_2, window_bounds = array<i64: 10, 128>}, {transform_indices = @transform_3, window_bounds = array<i64: 1, 128>}]} {
    %c0 = arith.constant 0 : index
    %c0_0 = arith.constant 0 : index
    %0 = vector.load %arg2[%c0, %c0_0] : memref<8x1xi32, #tpu.memory_space<vmem>>, vector<8x1xi32>
    %1 = tpu.iota {dimensions = array<i32: 1>} : vector<8x10xi32>
    %2 = vector.broadcast %0 : vector<8x1xi32> to vector<8x10xi32>
    %3 = arith.cmpi eq, %1, %2 : vector<8x10xi32>
    %4 = arith.extui %3 : vector<8x10xi1> to vector<8x10xi32>
    %5 = arith.sitofp %4 : vector<8x10xi32> to vector<8x10xf32>
    %c0_1 = arith.constant 0 : index
    %c0_2 = arith.constant 0 : index
    %6 = vector.load %arg3[%c0_1, %c0_2] : memref<10x128xf32, #tpu.memory_space<vmem>>, vector<10x128xf32>
    %cst = arith.constant dense<0.000000e+00> : vector<8x128xf32>
    %7 = tpu.matmul %5, %6, %cst {dimension_numbers = #tpu.dot_dimension_numbers<[1], [0], [0], [1], [0, 0, 1, 1], [], []>} : vector<8x10xf32>, vector<10x128xf32>, vector<8x128xf32> -> vector<8x128xf32>
    %c0_3 = arith.constant 0 : index
    %c0_4 = arith.constant 0 : index
    %8 = vector.load %arg1[%c0_3, %c0_4] : memref<8x128xf32, #tpu.memory_space<vmem>>, vector<8x128xf32>
    %9 = arith.subf %8, %7 : vector<8x128xf32>
    %10 = arith.mulf %9, %9 : vector<8x128xf32>
    %cst_5 = arith.constant dense<0.000000e+00> : vector<128xf32>
    %11 = vector.multi_reduction <add>, %10, %cst_5 [0] : vector<8x128xf32> to vector<128xf32>
    %12 = vector.shape_cast %11 : vector<128xf32> to vector<1x128xf32>
    %c0_6 = arith.constant 0 : index
    %c0_7 = arith.constant 0 : index
    %13 = vector.load %arg4[%c0_6, %c0_7] : memref<1x128xf32, #tpu.memory_space<vmem>>, vector<1x128xf32>
    tpu.vector_store %arg4[%c0_6, %c0_7], %12 {strides = array<i32>} : memref<1x128xf32, #tpu.memory_space<vmem>>, vector<1x128xf32>,
    return
  }
  func.func @transform_0(%arg0: i32) -> (i32, i32) {
    %c0_i32 = arith.constant 0 : i32
    %c0_i32_0 = arith.constant 0 : i32
    return %arg0, %c0_i32 : i32, i32
  }
  func.func @transform_1(%arg0: i32) -> (i32, i32) {
    %c0_i32 = arith.constant 0 : i32
    %c0_i32_0 = arith.constant 0 : i32
    return %arg0, %c0_i32 : i32, i32
  }
  func.func @transform_2(%arg0: i32) -> (i32, i32) {
    %c0_i32 = arith.constant 0 : i32
    %c0_i32_0 = arith.constant 0 : i32
    %c0_i32_1 = arith.constant 0 : i32
    return %c0_i32, %c0_i32_0 : i32, i32
  }
  func.func @transform_3(%arg0: i32) -> (i32, i32) {
    %c0_i32 = arith.constant 0 : i32
    %c0_i32_0 = arith.constant 0 : i32
    return %arg0, %c0_i32 : i32, i32
  }
}

</mosaic_0001>

<llo_original>
// kernel: tpu_custom_call.1
$region0: #{tpu_custom_call.1}
  #allocation0 [shape = 'u32[]', space=smem, size = 0x4, offset = 0x4, fixed_abs, tag = 'smem constant byte address 0x4 - core index']
  #allocation1 [shape = 'u32[144,128]{1,0:T(1,128)}', space=vmem, size = 0x12000, scoped, tag = 'internal scratch']
  %s0 = inlined_call_operand.vmem [shape: f32[8,128], index: 0, kind: input, shape index: {}]
  %s1 = inlined_call_operand.vmem [shape: s32[8,1], index: 1, kind: input, shape index: {}]
  %s2 = inlined_call_operand.hbm [shape: f32[10,128], index: 2, kind: input, shape index: {}]
  %s3 = inlined_call_operand.hbm [shape: f32[1,128], index: 3, kind: output, shape index: {}]
  %s4 = sld [smem:[#allocation0]]
  $region26: #{tpu_custom_call.1} parent=0
    _
  %s6 = ssub.s32 1, %s4
  %s7 = scalar_select 0, %s6, %s4
  $region1: #{tpu_custom_call.1} parent=0
    #allocation2 [shape = 'u8[8192]{0}', space=vmem, size = 0x2000, scoped, tag = 'input window, operand 2, single buffered']
    #allocation3 [shape = 's32[1]{0}', space=sflag, size = 0x4, scoped, tag = 'scoped memory for tpu_custom_call.1']
    #allocation4 [shape = 's32[1]{0}', space=sflag, size = 0x4, scoped, tag = 'scoped memory for tpu_custom_call.1']
    #allocation5 [shape = 'u8[512]{0}', space=vmem, size = 0x400, scoped, tag = 'output window, operand 0, single buffered']
    %8 = vsyncpa [#allocation3], 0
    %9 = vsyncpa [#allocation4], 0
    // Predicated region
    $region2: #{tpu_custom_call.1} parent=1 // pred_check
      _
    $region3: #{tpu_custom_call.1} parent=1 // pred_check_branch
      %11 = sbr.rel (0) target = $region5
    $region4: #{tpu_custom_call.1} parent=1 // pred_region
      _
    $region5: #{tpu_custom_call.1} parent=1 // pred_fallthru
      _
    // Predicated region
    $region6: #{tpu_custom_call.1} parent=1 // pred_check
      _
    $region7: #{tpu_custom_call.1} parent=1 // pred_check_branch
      %13 = sbr.rel (0) target = $region9
    $region8: #{tpu_custom_call.1} parent=1 // pred_region
      _
    $region9: #{tpu_custom_call.1} parent=1 // pred_fallthru
      _
    // Predicated region
    $region10: #{tpu_custom_call.1} parent=1 // pred_check
      _
    $region11: #{tpu_custom_call.1} parent=1 // pred_check_branch
      %15 = sbr.rel (0) target = $region13
    $region12: #{tpu_custom_call.1} parent=1 // pred_region
      %s17 = ssub.s32 256, 256
      %18 = vsyncadd [#allocation3], %s17
      %s19 = sshll.u32 [#allocation2], 4
      %s20 = int_to_ptr.vmem [resolvable:$true] %s19
      %25 = dma.hbm_to_vmem [thread:$0]  %s2, 256, %s20, [#allocation3], 128, 128, 8
    $region13: #{tpu_custom_call.1} parent=1 // pred_fallthru
      _
    // Predicated region
    $region14: #{tpu_custom_call.1} parent=1 // pred_check
      _
    $region15: #{tpu_custom_call.1} parent=1 // pred_check_branch
      %27 = sbr.rel (0) target = $region17
    $region16: #{tpu_custom_call.1} parent=1 // pred_region
      %28 = dma.done [#allocation3], 256
    $region17: #{tpu_custom_call.1} parent=1 // pred_fallthru
      _
    %v29 = vld [vmem:[%s1] sm:$0xff]
    %v30 = vlaneseq
    %v31 = vand.u32 %v30, 127
    %32 = vset.pattern.permute.xlu0 0
    %33 = vperm.xlu0 %32, %v29
    %v34 = vpop.permute.xlu0 %33
    %vm35 = vcmp.eq.s32.totalorder %v31, %v34
    %v36 = vsel %vm35, 1, 0
    %v37 = vcvt.s32.f32 %v36
    %v38 = vld [vmem:[#allocation2] sm:$0xff]
    %v39 = vld [vmem:[#allocation2 + $0x8] sm:$0x3]
    %vm40 = vcmask 80896
    %v42 = vsel %vm40, %v37, 0
    %vm44 = vcmask 1041408
    %v46 = vsel %vm44, %v39, 0
    %48 = vmatprep.subr.mxu0 0.0
    %49 = vmatpush1.msra.mxu0 0.0
    %50 = vmatprep.subr.mxu0 0.0
    %51 = vmatpush1.msra.mxu0 0.0
    %52 = vmatprep.subr.mxu0 0.0
    %53 = vmatpush1.msra.mxu0 0.0
    %54 = vmatprep.subr.mxu0 0.0
    %55 = vmatpush1.msra.mxu0 0.0
    %56 = vmatprep.subr.mxu0 0.0
    %57 = vmatpush1.msra.mxu0 0.0
    %58 = vmatprep.subr.mxu0 0.0
    %59 = vmatpush1.msra.mxu0 0.0
    %60 = vmatprep.subr.mxu0 0.0
    %61 = vmatpush1.msra.mxu0 0.0
    %62 = vmatprep.subr.mxu0 0.0
    %63 = vmatpush1.msra.mxu0 0.0
    %64 = vmatprep.subr.mxu0 0.0
    %65 = vmatpush1.msra.mxu0 0.0
    %66 = vmatprep.subr.mxu0 0.0
    %67 = vmatpush1.msra.mxu0 0.0
    %68 = vmatprep.subr.mxu0 0.0
    %69 = vmatpush1.msra.mxu0 0.0
    %70 = vmatprep.subr.mxu0 0.0
    %71 = vmatpush1.msra.mxu0 0.0
    %72 = vmatprep.subr.mxu0 0.0
    %73 = vmatpush1.msra.mxu0 0.0
    %74 = vmatprep.subr.mxu0 0.0
    %75 = vmatpush1.msra.mxu0 0.0
    %76 = vmatprep.subr.mxu0 0.0
    %77 = vmatpush1.msra.mxu0 %v46
    %78 = vmatprep.subr.mxu0 0.0
    %79 = vmatpush1.msra.mxu0 %v38
    %80 = vmatprep.subr.mxu0 0.0
    %81 = vmatpush2.msra.mxu0 0.0
    %82 = vmatprep.subr.mxu0 0.0
    %83 = vmatpush2.msra.mxu0 0.0
    %84 = vmatprep.subr.mxu0 0.0
    %85 = vmatpush2.msra.mxu0 0.0
    %86 = vmatprep.subr.mxu0 0.0
    %87 = vmatpush2.msra.mxu0 0.0
    %88 = vmatprep.subr.mxu0 0.0
    %89 = vmatpush2.msra.mxu0 0.0
    %90 = vmatprep.subr.mxu0 0.0
    %91 = vmatpush2.msra.mxu0 0.0
    %92 = vmatprep.subr.mxu0 0.0
    %93 = vmatpush2.msra.mxu0 0.0
    %94 = vmatprep.subr.mxu0 0.0
    %95 = vmatpush2.msra.mxu0 0.0
    %96 = vmatprep.subr.mxu0 0.0
    %97 = vmatpush2.msra.mxu0 0.0
    %98 = vmatprep.subr.mxu0 0.0
    %99 = vmatpush2.msra.mxu0 0.0
    %100 = vmatprep.subr.mxu0 0.0
    %101 = vmatpush2.msra.mxu0 0.0
    %102 = vmatprep.subr.mxu0 0.0
    %103 = vmatpush2.msra.mxu0 0.0
    %104 = vmatprep.subr.mxu0 0.0
    %105 = vmatpush2.msra.mxu0 0.0
    %106 = vmatprep.subr.mxu0 0.0
    %107 = vmatpush2.msra.mxu0 0.0
    %108 = vmatprep.subr.mxu0 0.0
    %109 = vmatpush2.msra.mxu0 0.0
    %110 = vmatprep.subr.mxu0 0.0
    %111 = vmatpush2.msra.mxu0 0.0
    %112 = vmatprep.mubr.f32.mxu0 0.0
    %113 = vmatmul.mubr.f32.gmra.mxu0 %v42
    %v114 = vpop.f32.mrf.mxu0
    %v115 = vadd.f32 0.0, %v114
    %v116 = vpop.f32.mrf.mxu0
    %117 = vdwg.mxu0
    %v118 = vld [vmem:[%s0] sm:$0xff]
    %v119 = vsub.f32 %v118, %v115
    %v120 = vmul.f32 %v119, %v119
    %v121 = vrot.slane %v120, 4
    %v122 = vadd.f32 %v120, %v121
    %v123 = vrot.slane %v122, 2
    %v124 = vadd.f32 %v122, %v123
    %v125 = vrot.slane %v124, 1
    %v126 = vadd.f32 %v124, %v125
    %127 = vst [vmem:[#allocation5] sm:$0x1] %v126
    // Predicated region
    $region18: #{tpu_custom_call.1} parent=1 // pred_check
      _
    $region19: #{tpu_custom_call.1} parent=1 // pred_check_branch
      %129 = sbr.rel (0) target = $region21
    $region20: #{tpu_custom_call.1} parent=1 // pred_region
      %s131 = ssub.s32 16, 16
      %132 = vsyncadd [#allocation4], %s131
      %s134 = sshll.u32 [#allocation5], 4
      %s135 = int_to_ptr.vmem [resolvable:$true] %s134
      %137 = dma.vmem_to_hbm [thread:$0]  %s135, 16, %s3, [#allocation4]
    $region21: #{tpu_custom_call.1} parent=1 // pred_fallthru
      _
    // Predicated region
    $region22: #{tpu_custom_call.1} parent=1 // pred_check
      _
    $region23: #{tpu_custom_call.1} parent=1 // pred_check_branch
      %139 = sbr.rel (0) target = $region25
    $region24: #{tpu_custom_call.1} parent=1 // pred_region
      %140 = dma.done [#allocation4], 16
    $region25: #{tpu_custom_call.1} parent=1 // pred_fallthru
      _
    %141 = vsyncpa [#allocation3], 1
    %142 = vsyncpa [#allocation4], 1

</llo_original>
